<compile_context>
chip_gen: v6e
topology: v6e:2x2x1
jax: 0.10.0
libtpu: 0.0.40
codegen_flags: <defaults>
</compile_context>

<pallas_src>
import math
import functools

import jax
import jax.numpy as jnp
from jax.experimental import pallas as pl
from jax.experimental.pallas import tpu as pltpu

_LOG_2PI = math.log(2.0 * math.pi)
_LANES = 128          # lane-dense output slab width
_TB_MAX = 1024        # max batch-tile rows per grid step


def _round_up(x, m):
    return ((x + m - 1) // m) * m


def actor_critic_kernel(state_ref, action_ref, inv_var_ref,
                        w1_ref, b1_ref, w2_ref, b2_ref, w3_ref, b3_ref,
                        out_ref, *, action_dim):
    x = state_ref[...]                                                # [TB, S]

    # ---- fused actor+critic MLP: 3 MXU matmuls on 128-wide activations ----
    h = jnp.tanh(jnp.dot(x, w1_ref[...],
                         preferred_element_type=jnp.float32) + b1_ref[...])
    h = jnp.tanh(jnp.dot(h, w2_ref[...],
                         preferred_element_type=jnp.float32) + b2_ref[...])
    o = jnp.dot(h, w3_ref[...],
                preferred_element_type=jnp.float32) + b3_ref[...]     # [TB, 128]

    lane = jax.lax.broadcasted_iota(jnp.int32, o.shape, 1)
    # lanes [0, A): action_mean = tanh(o); lane A: state value (no tanh);
    # padding lanes are exactly zero (zero weight columns / zero bias).
    out = jnp.where(lane < action_dim, jnp.tanh(o), o)

    # -0.5 * Mahalanobis term of the diagonal-Gaussian log_prob. inv_var is
    # zero-padded outside the action lanes, so value/padding lanes contribute 0.
    diff = action_ref[...] - out
    maha = jnp.sum(diff * diff * inv_var_ref[...], axis=-1, keepdims=True)

    # Pack everything into one lane-dense slab: lane A+1 <- -0.5*maha.
    out_ref[...] = jnp.where(lane == action_dim + 1, -0.5 * maha, out)


def init_linear(key, fan_in, fan_out):
    # PyTorch default nn.Linear init: U(-1/sqrt(fan_in), 1/sqrt(fan_in))
    kw, kb = jax.random.split(key)
    bound = 1.0 / math.sqrt(fan_in)
    w = jax.random.uniform(kw, (fan_in, fan_out), jnp.float32, -bound, bound)
    b = jax.random.uniform(kb, (1, fan_out), jnp.float32, -bound, bound)
    return w, b


def make_params(key, state_dim, action_dim):
    keys = jax.random.split(key, 6)
    aw1, ab1 = init_linear(keys[0], state_dim, 64)
    aw2, ab2 = init_linear(keys[1], 64, 64)
    aw3, ab3 = init_linear(keys[2], 64, action_dim)
    cw1, cb1 = init_linear(keys[3], state_dim, 64)
    cw2, cb2 = init_linear(keys[4], 64, 64)
    cw3, cb3 = init_linear(keys[5], 64, 1)
    return (aw1, ab1, aw2, ab2, aw3, ab3, cw1, cb1, cw2, cb2, cw3, cb3)


@jax.jit
def actor_critic_evaluate(state, action, action_var, params):
    (aw1, ab1, aw2, ab2, aw3, ab3, cw1, cb1, cw2, cb2, cw3, cb3) = params
    B, S = state.shape
    A = action.shape[-1]
    H = aw2.shape[0]           # 64
    W = 2 * H                  # 128 fused hidden width

    # ---- fuse actor/critic weights into 128-wide layers (trace time) ----
    w1 = jnp.concatenate([aw1, cw1], axis=1)                           # [S, 128]
    b1 = jnp.concatenate([ab1, cb1], axis=1)                           # [1, 128]
    zs = jnp.zeros((H, H), jnp.float32)
    w2 = jnp.concatenate(
        [jnp.concatenate([aw2, zs], axis=1),
         jnp.concatenate([zs, cw2], axis=1)], axis=0)                  # [128, 128]
    b2 = jnp.concatenate([ab2, cb2], axis=1)                           # [1, 128]
    w3 = jnp.zeros((W, _LANES), jnp.float32)
    w3 = w3.at[:H, :A].set(aw3).at[H:, A:A + 1].set(cw3)               # [128, 128]
    b3 = jnp.zeros((1, _LANES), jnp.float32)
    b3 = b3.at[:, :A].set(ab3).at[:, A:A + 1].set(cb3)                 # [1, 128]

    # Precompute 1/var once (zero-padded outside the action lanes).
    inv_var = jnp.zeros((1, _LANES), jnp.float32).at[:, :A].set(1.0 / action_var)

    # ---- batch tiling: large tiles, pad B to a multiple of the tile ----
    TB = min(_TB_MAX, _round_up(B, 8))
    Bp = _round_up(B, TB)
    state_p = jnp.zeros((Bp, S), jnp.float32).at[:B].set(state)
    action_p = jnp.zeros((Bp, _LANES), jnp.float32).at[:B, :A].set(action)

    row_spec = lambda shape: pl.BlockSpec(shape, lambda i: (i, 0))
    rep_spec = lambda shape: pl.BlockSpec(shape, lambda i: (0, 0))

    slab = pl.pallas_call(
        functools.partial(actor_critic_kernel, action_dim=A),
        out_shape=jax.ShapeDtypeStruct((Bp, _LANES), jnp.float32),
        grid=(Bp // TB,),
        in_specs=[
            row_spec((TB, S)),          # state
            row_spec((TB, _LANES)),     # action (zero-padded to 128 lanes)
            rep_spec((1, _LANES)),      # inv_var
            rep_spec((S, W)), rep_spec((1, W)),        # layer 1
            rep_spec((W, W)), rep_spec((1, W)),        # layer 2
            rep_spec((W, _LANES)), rep_spec((1, _LANES)),  # layer 3
        ],
        out_specs=row_spec((TB, _LANES)),
        compiler_params=pltpu.CompilerParams(
            dimension_semantics=("parallel",)),
    )(state_p, action_p, inv_var, w1, b1, w2, b2, w3, b3)

    # ---- batch-independent pieces done in the wrapper ----
    sum_log_var = jnp.sum(jnp.log(action_var))
    mean = slab[:B, :A]
    value = slab[:B, A:A + 1]
    logp = slab[:B, A + 1] - 0.5 * (A * _LOG_2PI + sum_log_var)
    ent = jnp.full((B,), 0.5 * A * (1.0 + _LOG_2PI), jnp.float32) + 0.5 * sum_log_var
    return mean, logp, value, ent


def reference_evaluate(state, action, action_var, params):
    (aw1, ab1, aw2, ab2, aw3, ab3, cw1, cb1, cw2, cb2, cw3, cb3) = params
    h = jnp.tanh(state @ aw1 + ab1)
    h = jnp.tanh(h @ aw2 + ab2)
    mean = jnp.tanh(h @ aw3 + ab3)
    v = jnp.tanh(state @ cw1 + cb1)
    v = jnp.tanh(v @ cw2 + cb2)
    value = v @ cw3 + cb3
    k = action.shape[-1]
    diff = action - mean
    maha = jnp.sum(diff * diff / action_var, axis=-1)
    slv = jnp.sum(jnp.log(action_var))
    logp = -0.5 * (maha + k * _LOG_2PI + slv)
    ent = jnp.full((action.shape[0],), 0.5 * k * (1.0 + _LOG_2PI) + 0.5 * slv)
    return mean, logp, value, ent


if __name__ == "__main__":
    B, STATE_DIM, ACTION_DIM = 8, 16, 4
    ACTION_STD_INIT = 0.6

    key = jax.random.PRNGKey(0)
    k_params, k_state, k_action = jax.random.split(key, 3)

    params = make_params(k_params, STATE_DIM, ACTION_DIM)
    state = jax.random.normal(k_state, (B, STATE_DIM), jnp.float32)
    action = jnp.clip(jax.random.normal(k_action, (B, ACTION_DIM), jnp.float32),
                      -1.0, 1.0)
    action_var = jnp.full((1, ACTION_DIM), ACTION_STD_INIT * ACTION_STD_INIT,
                          jnp.float32)

    mean, logp, value, ent = actor_critic_evaluate(state, action, action_var,
                                                   params)
    jax.block_until_ready((mean, logp, value, ent))

    r_mean, r_logp, r_value, r_ent = reference_evaluate(state, action,
                                                        action_var, params)
    assert jnp.allclose(mean, r_mean, atol=1e-4), "action_mean mismatch"
    assert jnp.allclose(logp, r_logp, atol=1e-4), "log_prob mismatch"
    assert jnp.allclose(value, r_value, atol=1e-4), "state_value mismatch"
    assert jnp.allclose(ent, r_ent, atol=1e-4), "entropy mismatch"

    print("KERNEL_OK")
</pallas_src>

<mosaic_0001>
module attributes {stable_mosaic.version = 11 : i64} {
  func.func @actor_critic_kernel(%arg0: i32, %arg1: memref<8x16xf32, #tpu.memory_space<vmem>>, %arg2: memref<8x128xf32, #tpu.memory_space<vmem>>, %arg3: memref<1x128xf32, #tpu.memory_space<vmem>>, %arg4: memref<16x128xf32, #tpu.memory_space<vmem>>, %arg5: memref<1x128xf32, #tpu.memory_space<vmem>>, %arg6: memref<128x128xf32, #tpu.memory_space<vmem>>, %arg7: memref<1x128xf32, #tpu.memory_space<vmem>>, %arg8: memref<128x128xf32, #tpu.memory_space<vmem>>, %arg9: memref<1x128xf32, #tpu.memory_space<vmem>>, %arg10: memref<8x128xf32, #tpu.memory_space<vmem>>) attributes {dimension_semantics = [#tpu.dimension_semantics<parallel>], iteration_bounds = array<i64: 1>, scalar_prefetch = 0 : i64, scratch_operands = 0 : i64, tpu.core_type = #tpu.core_type<tc>, window_params = [{transform_indices = @transform_0, window_bounds = array<i64: 8, 16>}, {transform_indices = @transform_1, window_bounds = array<i64: 8, 128>}, {pipeline_mode = #tpu.pipeline_mode<synchronous>, transform_indices = @transform_2, window_bounds = array<i64: 1, 128>}, {pipeline_mode = #tpu.pipeline_mode<synchronous>, transform_indices = @transform_3, window_bounds = array<i64: 16, 128>}, {pipeline_mode = #tpu.pipeline_mode<synchronous>, transform_indices = @transform_4, window_bounds = array<i64: 1, 128>}, {pipeline_mode = #tpu.pipeline_mode<synchronous>, transform_indices = @transform_5, window_bounds = array<i64: 128, 128>}, {pipeline_mode = #tpu.pipeline_mode<synchronous>, transform_indices = @transform_6, window_bounds = array<i64: 1, 128>}, {pipeline_mode = #tpu.pipeline_mode<synchronous>, transform_indices = @transform_7, window_bounds = array<i64: 128, 128>}, {pipeline_mode = #tpu.pipeline_mode<synchronous>, transform_indices = @transform_8, window_bounds = array<i64: 1, 128>}, {transform_indices = @transform_9, window_bounds = array<i64: 8, 128>}]} {
    %c0 = arith.constant 0 : index
    %c0_0 = arith.constant 0 : index
    %0 = vector.load %arg1[%c0, %c0_0] : memref<8x16xf32, #tpu.memory_space<vmem>>, vector<8x16xf32>
    %c0_1 = arith.constant 0 : index
    %c0_2 = arith.constant 0 : index
    %1 = vector.load %arg4[%c0_1, %c0_2] : memref<16x128xf32, #tpu.memory_space<vmem>>, vector<16x128xf32>
    %cst = arith.constant dense<0.000000e+00> : vector<8x128xf32>
    %2 = tpu.matmul %0, %1, %cst {dimension_numbers = #tpu.dot_dimension_numbers<[1], [0], [0], [1], [0, 0, 1, 1], [], []>} : vector<8x16xf32>, vector<16x128xf32>, vector<8x128xf32> -> vector<8x128xf32>
    %c0_3 = arith.constant 0 : index
    %c0_4 = arith.constant 0 : index
    %3 = vector.load %arg5[%c0_3, %c0_4] : memref<1x128xf32, #tpu.memory_space<vmem>>, vector<1x128xf32>
    %4 = vector.broadcast %3 : vector<1x128xf32> to vector<8x128xf32>
    %5 = arith.addf %2, %4 : vector<8x128xf32>
    %6 = math.tanh %5 : vector<8x128xf32>
    %c0_5 = arith.constant 0 : index
    %c0_6 = arith.constant 0 : index
    %7 = vector.load %arg6[%c0_5, %c0_6] : memref<128x128xf32, #tpu.memory_space<vmem>>, vector<128x128xf32>
    %cst_7 = arith.constant dense<0.000000e+00> : vector<8x128xf32>
    %8 = tpu.matmul %6, %7, %cst_7 {dimension_numbers = #tpu.dot_dimension_numbers<[1], [0], [0], [1], [0, 0, 1, 1], [], []>} : vector<8x128xf32>, vector<128x128xf32>, vector<8x128xf32> -> vector<8x128xf32>
    %c0_8 = arith.constant 0 : index
    %c0_9 = arith.constant 0 : index
    %9 = vector.load %arg7[%c0_8, %c0_9] : memref<1x128xf32, #tpu.memory_space<vmem>>, vector<1x128xf32>
    %10 = vector.broadcast %9 : vector<1x128xf32> to vector<8x128xf32>
    %11 = arith.addf %8, %10 : vector<8x128xf32>
    %12 = math.tanh %11 : vector<8x128xf32>
    %c0_10 = arith.constant 0 : index
    %c0_11 = arith.constant 0 : index
    %13 = vector.load %arg8[%c0_10, %c0_11] : memref<128x128xf32, #tpu.memory_space<vmem>>, vector<128x128xf32>
    %cst_12 = arith.constant dense<0.000000e+00> : vector<8x128xf32>
    %14 = tpu.matmul %12, %13, %cst_12 {dimension_numbers = #tpu.dot_dimension_numbers<[1], [0], [0], [1], [0, 0, 1, 1], [], []>} : vector<8x128xf32>, vector<128x128xf32>, vector<8x128xf32> -> vector<8x128xf32>
    %c0_13 = arith.constant 0 : index
    %c0_14 = arith.constant 0 : index
    %15 = vector.load %arg9[%c0_13, %c0_14] : memref<1x128xf32, #tpu.memory_space<vmem>>, vector<1x128xf32>
    %16 = vector.broadcast %15 : vector<1x128xf32> to vector<8x128xf32>
    %17 = arith.addf %14, %16 : vector<8x128xf32>
    %18 = tpu.iota {dimensions = array<i32: 1>} : vector<8x128xi32>
    %c4_i32 = arith.constant 4 : i32
    %19 = vector.broadcast %c4_i32 : i32 to vector<8x128xi32>
    %20 = arith.cmpi slt, %18, %19 : vector<8x128xi32>
    %21 = math.tanh %17 : vector<8x128xf32>
    %22 = arith.select %20, %21, %17 : vector<8x128xi1>, vector<8x128xf32>
    %c0_15 = arith.constant 0 : index
    %c0_16 = arith.constant 0 : index
    %23 = vector.load %arg2[%c0_15, %c0_16] : memref<8x128xf32, #tpu.memory_space<vmem>>, vector<8x128xf32>
    %24 = arith.subf %23, %22 : vector<8x128xf32>
    %25 = arith.mulf %24, %24 : vector<8x128xf32>
    %c0_17 = arith.constant 0 : index
    %c0_18 = arith.constant 0 : index
    %26 = vector.load %arg3[%c0_17, %c0_18] : memref<1x128xf32, #tpu.memory_space<vmem>>, vector<1x128xf32>
    %27 = vector.broadcast %26 : vector<1x128xf32> to vector<8x128xf32>
    %28 = arith.mulf %25, %27 : vector<8x128xf32>
    %cst_19 = arith.constant dense<0.000000e+00> : vector<8xf32>
    %29 = vector.multi_reduction <add>, %28, %cst_19 [1] : vector<8x128xf32> to vector<8xf32>
    %30 = vector.shape_cast %29 : vector<8xf32> to vector<8x1xf32>
    %c5_i32 = arith.constant 5 : i32
    %31 = vector.broadcast %c5_i32 : i32 to vector<8x128xi32>
    %32 = arith.cmpi eq, %18, %31 : vector<8x128xi32>
    %cst_20 = arith.constant -5.000000e-01 : f32
    %33 = vector.broadcast %cst_20 : f32 to vector<8x1xf32>
    %34 = arith.mulf %33, %30 : vector<8x1xf32>
    %35 = vector.shape_cast %34 : vector<8x1xf32> to vector<8x1xf32>
    %36 = vector.broadcast %35 : vector<8x1xf32> to vector<8x128xf32>
    %37 = arith.select %32, %36, %22 : vector<8x128xi1>, vector<8x128xf32>
    %c0_21 = arith.constant 0 : index
    %c0_22 = arith.constant 0 : index
    %38 = vector.load %arg10[%c0_21, %c0_22] : memref<8x128xf32, #tpu.memory_space<vmem>>, vector<8x128xf32>
    tpu.vector_store %arg10[%c0_21, %c0_22], %37 {strides = array<i32>} : memref<8x128xf32, #tpu.memory_space<vmem>>, vector<8x128xf32>,
    return
  }
  func.func @transform_0(%arg0: i32) -> (i32, i32) {
    %c0_i32 = arith.constant 0 : i32
    %c0_i32_0 = arith.constant 0 : i32
    return %arg0, %c0_i32 : i32, i32
  }
  func.func @transform_1(%arg0: i32) -> (i32, i32) {
    %c0_i32 = arith.constant 0 : i32
    %c0_i32_0 = arith.constant 0 : i32
    return %arg0, %c0_i32 : i32, i32
  }
  func.func @transform_2(%arg0: i32) -> (i32, i32) {
    %c0_i32 = arith.constant 0 : i32
    %c0_i32_0 = arith.constant 0 : i32
    %c0_i32_1 = arith.constant 0 : i32
    return %c0_i32, %c0_i32_0 : i32, i32
  }
  func.func @transform_3(%arg0: i32) -> (i32, i32) {
    %c0_i32 = arith.constant 0 : i32
    %c0_i32_0 = arith.constant 0 : i32
    %c0_i32_1 = arith.constant 0 : i32
    return %c0_i32, %c0_i32_0 : i32, i32
  }
  func.func @transform_4(%arg0: i32) -> (i32, i32) {
    %c0_i32 = arith.constant 0 : i32
    %c0_i32_0 = arith.constant 0 : i32
    %c0_i32_1 = arith.constant 0 : i32
    return %c0_i32, %c0_i32_0 : i32, i32
  }
  func.func @transform_5(%arg0: i32) -> (i32, i32) {
    %c0_i32 = arith.constant 0 : i32
    %c0_i32_0 = arith.constant 0 : i32
    %c0_i32_1 = arith.constant 0 : i32
    return %c0_i32, %c0_i32_0 : i32, i32
  }
  func.func @transform_6(%arg0: i32) -> (i32, i32) {
    %c0_i32 = arith.constant 0 : i32
    %c0_i32_0 = arith.constant 0 : i32
    %c0_i32_1 = arith.constant 0 : i32
    return %c0_i32, %c0_i32_0 : i32, i32
  }
  func.func @transform_7(%arg0: i32) -> (i32, i32) {
    %c0_i32 = arith.constant 0 : i32
    %c0_i32_0 = arith.constant 0 : i32
    %c0_i32_1 = arith.constant 0 : i32
    return %c0_i32, %c0_i32_0 : i32, i32
  }
  func.func @transform_8(%arg0: i32) -> (i32, i32) {
    %c0_i32 = arith.constant 0 : i32
    %c0_i32_0 = arith.constant 0 : i32
    %c0_i32_1 = arith.constant 0 : i32
    return %c0_i32, %c0_i32_0 : i32, i32
  }
  func.func @transform_9(%arg0: i32) -> (i32, i32) {
    %c0_i32 = arith.constant 0 : i32
    %c0_i32_0 = arith.constant 0 : i32
    return %arg0, %c0_i32 : i32, i32
  }
}

</mosaic_0001>

<llo_original>
// kernel: actor_critic_evaluate.1
$region0: #{actor_critic_evaluate.1}
  #allocation0 [shape = 'u32[]', space=smem, size = 0x4, offset = 0x4, fixed_abs, tag = 'smem constant byte address 0x4 - core index']
  #allocation1 [shape = 'u32[144,128]{1,0:T(1,128)}', space=vmem, size = 0x12000, scoped, tag = 'internal scratch']
  %s0 = inlined_call_operand.vmem [shape: f32[8,16], index: 0, kind: input, shape index: {}]
  %s1 = inlined_call_operand.vmem [shape: f32[8,128], index: 1, kind: input, shape index: {}]
  %s2 = inlined_call_operand.vmem [shape: f32[1,128], index: 2, kind: input, shape index: {}]
  %s3 = inlined_call_operand.vmem [shape: f32[16,128], index: 3, kind: input, shape index: {}]
  %s4 = inlined_call_operand.vmem [shape: f32[1,128], index: 4, kind: input, shape index: {}]
  %s5 = inlined_call_operand.vmem [shape: f32[128,128], index: 5, kind: input, shape index: {}]
  %s6 = inlined_call_operand.vmem [shape: f32[1,128], index: 6, kind: input, shape index: {}]
  %s7 = inlined_call_operand.vmem [shape: f32[128,128], index: 7, kind: input, shape index: {}]
  %s8 = inlined_call_operand.vmem [shape: f32[1,128], index: 8, kind: input, shape index: {}]
  %s9 = inlined_call_operand.vmem [shape: f32[8,128], index: 9, kind: output, shape index: {}]
  %s10 = sld [smem:[#allocation0]]
  $region46: #{actor_critic_evaluate.1} parent=0
    _
  %s12 = ssub.s32 1, %s10
  %s13 = scalar_select 0, %s12, %s10
  // Predicated region
  $region2: #{actor_critic_evaluate.1} parent=0 // pred_check
    _
  $region3: #{actor_critic_evaluate.1} parent=0 // pred_check_branch
    %15 = sbr.rel (0) target = $region5
  $region4: #{actor_critic_evaluate.1} parent=0 // pred_region
    _
  $region5: #{actor_critic_evaluate.1} parent=0 // pred_fallthru
    _
  // Predicated region
  $region6: #{actor_critic_evaluate.1} parent=0 // pred_check
    _
  $region7: #{actor_critic_evaluate.1} parent=0 // pred_check_branch
    %17 = sbr.rel (0) target = $region9
  $region8: #{actor_critic_evaluate.1} parent=0 // pred_region
    _
  $region9: #{actor_critic_evaluate.1} parent=0 // pred_fallthru
    _
  // Predicated region
  $region10: #{actor_critic_evaluate.1} parent=0 // pred_check
    _
  $region11: #{actor_critic_evaluate.1} parent=0 // pred_check_branch
    %19 = sbr.rel (0) target = $region13
  $region12: #{actor_critic_evaluate.1} parent=0 // pred_region
    _
  $region13: #{actor_critic_evaluate.1} parent=0 // pred_fallthru
    _
  // Predicated region
  $region14: #{actor_critic_evaluate.1} parent=0 // pred_check
    _
  $region15: #{actor_critic_evaluate.1} parent=0 // pred_check_branch
    %21 = sbr.rel (0) target = $region17
  $region16: #{actor_critic_evaluate.1} parent=0 // pred_region
    _
  $region17: #{actor_critic_evaluate.1} parent=0 // pred_fallthru
    _
  // Predicated region
  $region18: #{actor_critic_evaluate.1} parent=0 // pred_check
    _
  $region19: #{actor_critic_evaluate.1} parent=0 // pred_check_branch
    %23 = sbr.rel (0) target = $region21
  $region20: #{actor_critic_evaluate.1} parent=0 // pred_region
    _
  $region21: #{actor_critic_evaluate.1} parent=0 // pred_fallthru
    _
  // Predicated region
  $region22: #{actor_critic_evaluate.1} parent=0 // pred_check
    _
  $region23: #{actor_critic_evaluate.1} parent=0 // pred_check_branch
    %25 = sbr.rel (0) target = $region25
  $region24: #{actor_critic_evaluate.1} parent=0 // pred_region
    _
  $region25: #{actor_critic_evaluate.1} parent=0 // pred_fallthru
    _
  // Predicated region
  $region26: #{actor_critic_evaluate.1} parent=0 // pred_check
    _
  $region27: #{actor_critic_evaluate.1} parent=0 // pred_check_branch
    %27 = sbr.rel (0) target = $region29
  $region28: #{actor_critic_evaluate.1} parent=0 // pred_region
    _
  $region29: #{actor_critic_evaluate.1} parent=0 // pred_fallthru
    _
  // Predicated region
  $region30: #{actor_critic_evaluate.1} parent=0 // pred_check
    _
  $region31: #{actor_critic_evaluate.1} parent=0 // pred_check_branch
    %29 = sbr.rel (0) target = $region33
  $region32: #{actor_critic_evaluate.1} parent=0 // pred_region
    _
  $region33: #{actor_critic_evaluate.1} parent=0 // pred_fallthru
    _
  // Predicated region
  $region34: #{actor_critic_evaluate.1} parent=0 // pred_check
    _
  $region35: #{actor_critic_evaluate.1} parent=0 // pred_check_branch
    %31 = sbr.rel (0) target = $region37
  $region36: #{actor_critic_evaluate.1} parent=0 // pred_region
    _
  $region37: #{actor_critic_evaluate.1} parent=0 // pred_fallthru
    _
  %v32 = vld [vmem:[%s0] sm:$0xff]
  %v33 = vld [vmem:[%s3] sm:$0xff]
  %v34 = vld [vmem:[%s3 + $0x8] sm:$0xff]
  %v35 = vld [vmem:[%s4] sm:$0x1]
  %v37 = vlaneseq
  %v38 = vshrl.u32 %v37, 7
  %v39 = vsub.s32 0, %v38
  %v40 = vrot.slane %v35, %v39
  %vm42 = vcmask 130048
  %v44 = vsel %vm42, %v32, 0
  %46 = vmatprep.subr.mxu0 0.0
  %47 = vmatpush1.msra.mxu0 0.0
  %48 = vmatprep.subr.mxu0 0.0
  %49 = vmatpush1.msra.mxu0 0.0
  %50 = vmatprep.subr.mxu0 0.0
  %51 = vmatpush1.msra.mxu0 0.0
  %52 = vmatprep.subr.mxu0 0.0
  %53 = vmatpush1.msra.mxu0 0.0
  %54 = vmatprep.subr.mxu0 0.0
  %55 = vmatpush1.msra.mxu0 0.0
  %56 = vmatprep.subr.mxu0 0.0
  %57 = vmatpush1.msra.mxu0 0.0
  %58 = vmatprep.subr.mxu0 0.0
  %59 = vmatpush1.msra.mxu0 0.0
  %60 = vmatprep.subr.mxu0 0.0
  %61 = vmatpush1.msra.mxu0 0.0
  %62 = vmatprep.subr.mxu0 0.0
  %63 = vmatpush1.msra.mxu0 0.0
  %64 = vmatprep.subr.mxu0 0.0
  %65 = vmatpush1.msra.mxu0 0.0
  %66 = vmatprep.subr.mxu0 0.0
  %67 = vmatpush1.msra.mxu0 0.0
  %68 = vmatprep.subr.mxu0 0.0
  %69 = vmatpush1.msra.mxu0 0.0
  %70 = vmatprep.subr.mxu0 0.0
  %71 = vmatpush1.msra.mxu0 0.0
  %72 = vmatprep.subr.mxu0 0.0
  %73 = vmatpush1.msra.mxu0 0.0
  %74 = vmatprep.subr.mxu0 0.0
  %75 = vmatpush1.msra.mxu0 %v34
  %76 = vmatprep.subr.mxu0 0.0
  %77 = vmatpush1.msra.mxu0 %v33
  %78 = vmatprep.subr.mxu0 0.0
  %79 = vmatpush2.msra.mxu0 0.0
  %80 = vmatprep.subr.mxu0 0.0
  %81 = vmatpush2.msra.mxu0 0.0
  %82 = vmatprep.subr.mxu0 0.0
  %83 = vmatpush2.msra.mxu0 0.0
  %84 = vmatprep.subr.mxu0 0.0
  %85 = vmatpush2.msra.mxu0 0.0
  %86 = vmatprep.subr.mxu0 0.0
  %87 = vmatpush2.msra.mxu0 0.0
  %88 = vmatprep.subr.mxu0 0.0
  %89 = vmatpush2.msra.mxu0 0.0
  %90 = vmatprep.subr.mxu0 0.0
  %91 = vmatpush2.msra.mxu0 0.0
  %92 = vmatprep.subr.mxu0 0.0
  %93 = vmatpush2.msra.mxu0 0.0
  %94 = vmatprep.subr.mxu0 0.0
  %95 = vmatpush2.msra.mxu0 0.0
  %96 = vmatprep.subr.mxu0 0.0
  %97 = vmatpush2.msra.mxu0 0.0
  %98 = vmatprep.subr.mxu0 0.0
  %99 = vmatpush2.msra.mxu0 0.0
  %100 = vmatprep.subr.mxu0 0.0
  %101 = vmatpush2.msra.mxu0 0.0
  %102 = vmatprep.subr.mxu0 0.0
  %103 = vmatpush2.msra.mxu0 0.0
  %104 = vmatprep.subr.mxu0 0.0
  %105 = vmatpush2.msra.mxu0 0.0
  %106 = vmatprep.subr.mxu0 0.0
  %107 = vmatpush2.msra.mxu0 0.0
  %108 = vmatprep.subr.mxu0 0.0
  %109 = vmatpush2.msra.mxu0 0.0
  %110 = vmatprep.mubr.f32.mxu0 0.0
  %111 = vmatmul.mubr.f32.gmra.mxu0 %v44
  %v112 = vpop.f32.mrf.mxu0
  %v113 = vadd.f32 %v40, %v112
  %v114 = vpop.f32.mrf.mxu0
  %115 = vdwg.mxu0
  %v116 = vtanh.pop %v113
  %v117 = vld [vmem:[%s5] sm:$0xff]
  %v118 = vld [vmem:[%s5 + $0x8] sm:$0xff]
  %v119 = vld [vmem:[%s5 + $0x10] sm:$0xff]
  %v120 = vld [vmem:[%s5 + $0x18] sm:$0xff]
  %v121 = vld [vmem:[%s5 + $0x20] sm:$0xff]
  %v122 = vld [vmem:[%s5 + $0x28] sm:$0xff]
  %v123 = vld [vmem:[%s5 + $0x30] sm:$0xff]
  %v124 = vld [vmem:[%s5 + $0x38] sm:$0xff]
  %v125 = vld [vmem:[%s5 + $0x40] sm:$0xff]
  %v126 = vld [vmem:[%s5 + $0x48] sm:$0xff]
  %v127 = vld [vmem:[%s5 + $0x50] sm:$0xff]
  %v128 = vld [vmem:[%s5 + $0x58] sm:$0xff]
  %v129 = vld [vmem:[%s5 + $0x60] sm:$0xff]
  %v130 = vld [vmem:[%s5 + $0x68] sm:$0xff]
  %v131 = vld [vmem:[%s5 + $0x70] sm:$0xff]
  %v132 = vld [vmem:[%s5 + $0x78] sm:$0xff]
  %v133 = vld [vmem:[%s6] sm:$0x1]
  %v135 = vlaneseq
  %v136 = vshrl.u32 %v135, 7
  %v137 = vsub.s32 0, %v136
  %v138 = vrot.slane %v133, %v137
  %140 = vmatprep.subr.mxu0 0.0
  %141 = vmatpush1.msra.mxu0 %v132
  %142 = vmatprep.subr.mxu0 0.0
  %143 = vmatpush1.msra.mxu0 %v131
  %144 = vmatprep.subr.mxu0 0.0
  %145 = vmatpush1.msra.mxu0 %v130
  %146 = vmatprep.subr.mxu0 0.0
  %147 = vmatpush1.msra.mxu0 %v129
  %148 = vmatprep.subr.mxu0 0.0
  %149 = vmatpush1.msra.mxu0 %v128
  %150 = vmatprep.subr.mxu0 0.0
  %151 = vmatpush1.msra.mxu0 %v127
  %152 = vmatprep.subr.mxu0 0.0
  %153 = vmatpush1.msra.mxu0 %v126
  %154 = vmatprep.subr.mxu0 0.0
  %155 = vmatpush1.msra.mxu0 %v125
  %156 = vmatprep.subr.mxu0 0.0
  %157 = vmatpush1.msra.mxu0 %v124
  %158 = vmatprep.subr.mxu0 0.0
  %159 = vmatpush1.msra.mxu0 %v123
  %160 = vmatprep.subr.mxu0 0.0
  %161 = vmatpush1.msra.mxu0 %v122
  %162 = vmatprep.subr.mxu0 0.0
  %163 = vmatpush1.msra.mxu0 %v121
  %164 = vmatprep.subr.mxu0 0.0
  %165 = vmatpush1.msra.mxu0 %v120
  %166 = vmatprep.subr.mxu0 0.0
  %167 = vmatpush1.msra.mxu0 %v119
  %168 = vmatprep.subr.mxu0 0.0
  %169 = vmatpush1.msra.mxu0 %v118
  %170 = vmatprep.subr.mxu0 0.0
  %171 = vmatpush1.msra.mxu0 %v117
  %172 = vmatprep.subr.mxu0 0.0
  %173 = vmatpush2.msra.mxu0 0.0
  %174 = vmatprep.subr.mxu0 0.0
  %175 = vmatpush2.msra.mxu0 0.0
  %176 = vmatprep.subr.mxu0 0.0
  %177 = vmatpush2.msra.mxu0 0.0
  %178 = vmatprep.subr.mxu0 0.0
  %179 = vmatpush2.msra.mxu0 0.0
  %180 = vmatprep.subr.mxu0 0.0
  %181 = vmatpush2.msra.mxu0 0.0
  %182 = vmatprep.subr.mxu0 0.0
  %183 = vmatpush2.msra.mxu0 0.0
  %184 = vmatprep.subr.mxu0 0.0
  %185 = vmatpush2.msra.mxu0 0.0
  %186 = vmatprep.subr.mxu0 0.0
  %187 = vmatpush2.msra.mxu0 0.0
  %188 = vmatprep.subr.mxu0 0.0
  %189 = vmatpush2.msra.mxu0 0.0
  %190 = vmatprep.subr.mxu0 0.0
  %191 = vmatpush2.msra.mxu0 0.0
  %192 = vmatprep.subr.mxu0 0.0
  %193 = vmatpush2.msra.mxu0 0.0
  %194 = vmatprep.subr.mxu0 0.0
  %195 = vmatpush2.msra.mxu0 0.0
  %196 = vmatprep.subr.mxu0 0.0
  %197 = vmatpush2.msra.mxu0 0.0
  %198 = vmatprep.subr.mxu0 0.0
  %199 = vmatpush2.msra.mxu0 0.0
  %200 = vmatprep.subr.mxu0 0.0
  %201 = vmatpush2.msra.mxu0 0.0
  %202 = vmatprep.subr.mxu0 0.0
  %203 = vmatpush2.msra.mxu0 0.0
  %204 = vmatprep.mubr.f32.mxu0 0.0
  %205 = vmatmul.mubr.f32.gmra.mxu0 %v116
  %v206 = vpop.f32.mrf.mxu0
  %v207 = vadd.f32 %v138, %v206
  %v208 = vpop.f32.mrf.mxu0
  %209 = vdwg.mxu0
  %v210 = vtanh.pop %v207
  %v211 = vld [vmem:[%s7] sm:$0xff]
  %v212 = vld [vmem:[%s7 + $0x8] sm:$0xff]
  %v213 = vld [vmem:[%s7 + $0x10] sm:$0xff]
  %v214 = vld [vmem:[%s7 + $0x18] sm:$0xff]
  %v215 = vld [vmem:[%s7 + $0x20] sm:$0xff]
  %v216 = vld [vmem:[%s7 + $0x28] sm:$0xff]
  %v217 = vld [vmem:[%s7 + $0x30] sm:$0xff]
  %v218 = vld [vmem:[%s7 + $0x38] sm:$0xff]
  %v219 = vld [vmem:[%s7 + $0x40] sm:$0xff]
  %v220 = vld [vmem:[%s7 + $0x48] sm:$0xff]
  %v221 = vld [vmem:[%s7 + $0x50] sm:$0xff]
  %v222 = vld [vmem:[%s7 + $0x58] sm:$0xff]
  %v223 = vld [vmem:[%s7 + $0x60] sm:$0xff]
  %v224 = vld [vmem:[%s7 + $0x68] sm:$0xff]
  %v225 = vld [vmem:[%s7 + $0x70] sm:$0xff]
  %v226 = vld [vmem:[%s7 + $0x78] sm:$0xff]
  %v227 = vld [vmem:[%s8] sm:$0x1]
  %v229 = vlaneseq
  %v230 = vshrl.u32 %v229, 7
  %v231 = vsub.s32 0, %v230
  %v232 = vrot.slane %v227, %v231
  %234 = vmatprep.subr.mxu0 0.0
  %235 = vmatpush1.msra.mxu0 %v226
  %236 = vmatprep.subr.mxu0 0.0
  %237 = vmatpush1.msra.mxu0 %v225
  %238 = vmatprep.subr.mxu0 0.0
  %239 = vmatpush1.msra.mxu0 %v224
  %240 = vmatprep.subr.mxu0 0.0
  %241 = vmatpush1.msra.mxu0 %v223
  %242 = vmatprep.subr.mxu0 0.0
  %243 = vmatpush1.msra.mxu0 %v222
  %244 = vmatprep.subr.mxu0 0.0
  %245 = vmatpush1.msra.mxu0 %v221
  %246 = vmatprep.subr.mxu0 0.0
  %247 = vmatpush1.msra.mxu0 %v220
  %248 = vmatprep.subr.mxu0 0.0
  %249 = vmatpush1.msra.mxu0 %v219
  %250 = vmatprep.subr.mxu0 0.0
  %251 = vmatpush1.msra.mxu0 %v218
  %252 = vmatprep.subr.mxu0 0.0
  %253 = vmatpush1.msra.mxu0 %v217
  %254 = vmatprep.subr.mxu0 0.0
  %255 = vmatpush1.msra.mxu0 %v216
  %256 = vmatprep.subr.mxu0 0.0
  %257 = vmatpush1.msra.mxu0 %v215
  %258 = vmatprep.subr.mxu0 0.0
  %259 = vmatpush1.msra.mxu0 %v214
  %260 = vmatprep.subr.mxu0 0.0
  %261 = vmatpush1.msra.mxu0 %v213
  %262 = vmatprep.subr.mxu0 0.0
  %263 = vmatpush1.msra.mxu0 %v212
  %264 = vmatprep.subr.mxu0 0.0
  %265 = vmatpush1.msra.mxu0 %v211
  %266 = vmatprep.subr.mxu0 0.0
  %267 = vmatpush2.msra.mxu0 0.0
  %268 = vmatprep.subr.mxu0 0.0
  %269 = vmatpush2.msra.mxu0 0.0
  %270 = vmatprep.subr.mxu0 0.0
  %271 = vmatpush2.msra.mxu0 0.0
  %272 = vmatprep.subr.mxu0 0.0
  %273 = vmatpush2.msra.mxu0 0.0
  %274 = vmatprep.subr.mxu0 0.0
  %275 = vmatpush2.msra.mxu0 0.0
  %276 = vmatprep.subr.mxu0 0.0
  %277 = vmatpush2.msra.mxu0 0.0
  %278 = vmatprep.subr.mxu0 0.0
  %279 = vmatpush2.msra.mxu0 0.0
  %280 = vmatprep.subr.mxu0 0.0
  %281 = vmatpush2.msra.mxu0 0.0
  %282 = vmatprep.subr.mxu0 0.0
  %283 = vmatpush2.msra.mxu0 0.0
  %284 = vmatprep.subr.mxu0 0.0
  %285 = vmatpush2.msra.mxu0 0.0
  %286 = vmatprep.subr.mxu0 0.0
  %287 = vmatpush2.msra.mxu0 0.0
  %288 = vmatprep.subr.mxu0 0.0
  %289 = vmatpush2.msra.mxu0 0.0
  %290 = vmatprep.subr.mxu0 0.0
  %291 = vmatpush2.msra.mxu0 0.0
  %292 = vmatprep.subr.mxu0 0.0
  %293 = vmatpush2.msra.mxu0 0.0
  %294 = vmatprep.subr.mxu0 0.0
  %295 = vmatpush2.msra.mxu0 0.0
  %296 = vmatprep.subr.mxu0 0.0
  %297 = vmatpush2.msra.mxu0 0.0
  %298 = vmatprep.mubr.f32.mxu0 0.0
  %299 = vmatmul.mubr.f32.gmra.mxu0 %v210
  %v300 = vpop.f32.mrf.mxu0
  %v301 = vadd.f32 %v232, %v300
  %v302 = vpop.f32.mrf.mxu0
  %303 = vdwg.mxu0
  %v304 = vlaneseq
  %v305 = vand.u32 %v304, 127
  %vm306 = vcmp.lt.s32.totalorder %v305, 4
  %v307 = vtanh.pop %v301
  %v308 = vsel %vm306, %v307, %v301
  %v309 = vld [vmem:[%s1] sm:$0xff]
  %v310 = vsub.f32 %v309, %v308
  %v311 = vmul.f32 %v310, %v310
  %v312 = vld [vmem:[%s2] sm:$0x1]
  %v314 = vlaneseq
  %v315 = vshrl.u32 %v314, 7
  %v316 = vsub.s32 0, %v315
  %v317 = vrot.slane %v312, %v316
  %v319 = vmul.f32 %v311, %v317
  %320 = vadd.xlane.f32.xlu0 %v319
  %v321 = vpop.xlane.xlu0 %320
  %vm322 = vcmp.eq.s32.totalorder %v305, 5
  %v323 = vmul.f32 %v321, -0.5
  %v324 = vsel %vm322, %v323, %v308
  %325 = vst [vmem:[%s9] sm:$0xff] %v324
  // Predicated region
  $region38: #{actor_critic_evaluate.1} parent=0 // pred_check
    _
  $region39: #{actor_critic_evaluate.1} parent=0 // pred_check_branch
    %327 = sbr.rel (0) target = $region41
  $region40: #{actor_critic_evaluate.1} parent=0 // pred_region
    _
  $region41: #{actor_critic_evaluate.1} parent=0 // pred_fallthru
    _
  // Predicated region
  $region42: #{actor_critic_evaluate.1} parent=0 // pred_check
    _
  $region43: #{actor_critic_evaluate.1} parent=0 // pred_check_branch
    %329 = sbr.rel (0) target = $region45
  $region44: #{actor_critic_evaluate.1} parent=0 // pred_region
    _
  $region45: #{actor_critic_evaluate.1} parent=0 // pred_fallthru
    _

</llo_original>
